<compile_context>
chip_gen: v6e
topology: v6e:2x2x1
jax: 0.10.0
libtpu: 0.0.40
codegen_flags: <defaults>
</compile_context>

<pallas_src>
import jax
import jax.numpy as jnp
from jax.experimental import pallas as pl
from jax.experimental.pallas import tpu as pltpu

INPUT_SIZE = 784
ENC_H1, ENC_H2 = 256, 32
LATENT = 10
DEC_LATENT = LATENT - 1          # dimension_decrease=1
DEC_H1, DEC_H2 = 32, 256
HEADS = 2 * LATENT               # fused [fc_mean || fc_logvar]
DEFAULT_TILE_BATCH = 1024        # rows per grid step (bf16 x block ~1.6 MiB)
ROW_ALIGN = 16                   # bf16 sublane packing
VMEM_LIMIT_BYTES = 64 << 20      # raise v5e's 16 MiB default scoped limit


def _round_up(n, m):
    return ((n + m - 1) // m) * m


def _pick_tile(batch, tile_batch):
    # >= 2 grid steps whenever batch allows it (v7x megacore), rows multiple of 16.
    return min(tile_batch, _round_up(max(1, (batch + 1) // 2), ROW_ALIGN))


# ---------------------------------------------------------------------------
# Kernels
# ---------------------------------------------------------------------------
def _encoder_kernel(x_ref, w1_ref, b1_ref, w2_ref, b2_ref, wh_ref, bh_ref,
                    out_ref):
    h = jnp.dot(x_ref[...], w1_ref[...], preferred_element_type=jnp.float32)
    h = jnp.maximum(h + b1_ref[...], 0.0).astype(jnp.bfloat16)
    h = jnp.dot(h, w2_ref[...], preferred_element_type=jnp.float32)
    h = jnp.maximum(h + b2_ref[...], 0.0).astype(jnp.bfloat16)
    heads = jnp.dot(h, wh_ref[...], preferred_element_type=jnp.float32) + bh_ref[...]
    out_ref[...] = heads.astype(out_ref.dtype)      # (tb, 20) = mean || logvar


def _decoder_kernel(z_ref, c_ref, w1_ref, b1_ref, w2_ref, b2_ref,
                    w3_ref, b3_ref, o_ref):
    h = jnp.dot(z_ref[...], w1_ref[...], preferred_element_type=jnp.float32)
    h = jnp.maximum(h + b1_ref[...], 0.0).astype(jnp.bfloat16)
    h = jnp.dot(h, w2_ref[...], preferred_element_type=jnp.float32)
    h = jnp.maximum(h + b2_ref[...], 0.0).astype(jnp.bfloat16)
    y = jnp.dot(h, w3_ref[...], preferred_element_type=jnp.float32) + b3_ref[...]
    x_recon = jax.nn.sigmoid(y) * c_ref[...]         # sigmoid(out) * c
    o_ref[...] = jnp.minimum(x_recon, 1.0).astype(o_ref.dtype)   # clamp(max=1)


# ---------------------------------------------------------------------------
# pallas_call wrappers
# ---------------------------------------------------------------------------
def _encoder_call(x2, p, tb):
    bp = x2.shape[0]
    return pl.pallas_call(
        _encoder_kernel,
        out_shape=jax.ShapeDtypeStruct((bp, HEADS), jnp.float32),
        grid_spec=pltpu.PrefetchScalarGridSpec(
            num_scalar_prefetch=0,
            grid=(bp // tb,),
            in_specs=[
                pl.BlockSpec((tb, INPUT_SIZE), lambda i: (i, 0)),       # x: streamed bf16
                pl.BlockSpec((INPUT_SIZE, ENC_H1), lambda i: (0, 0)),   # weights: resident
                pl.BlockSpec((1, ENC_H1), lambda i: (0, 0)),
                pl.BlockSpec((ENC_H1, ENC_H2), lambda i: (0, 0)),
                pl.BlockSpec((1, ENC_H2), lambda i: (0, 0)),
                pl.BlockSpec((ENC_H2, HEADS), lambda i: (0, 0)),        # fused heads
                pl.BlockSpec((1, HEADS), lambda i: (0, 0)),
            ],
            out_specs=pl.BlockSpec((tb, HEADS), lambda i: (i, 0)),
        ),
        compiler_params=pltpu.CompilerParams(
            dimension_semantics=("parallel",),
            vmem_limit_bytes=VMEM_LIMIT_BYTES),
    )(x2, p["we1_t"], p["be1"], p["we2_t"], p["be2"], p["wh_t"], p["bh"])


def _decoder_call(z, c, p, tb):
    bp = z.shape[0]
    return pl.pallas_call(
        _decoder_kernel,
        out_shape=jax.ShapeDtypeStruct((bp, INPUT_SIZE), jnp.float32),
        grid_spec=pltpu.PrefetchScalarGridSpec(
            num_scalar_prefetch=0,
            grid=(bp // tb,),
            in_specs=[
                pl.BlockSpec((tb, DEC_LATENT), lambda i: (i, 0)),       # z: streamed bf16
                pl.BlockSpec((tb, 1), lambda i: (i, 0)),                # c: streamed f32
                pl.BlockSpec((DEC_LATENT, DEC_H1), lambda i: (0, 0)),   # weights: resident
                pl.BlockSpec((1, DEC_H1), lambda i: (0, 0)),
                pl.BlockSpec((DEC_H1, DEC_H2), lambda i: (0, 0)),
                pl.BlockSpec((1, DEC_H2), lambda i: (0, 0)),
                pl.BlockSpec((DEC_H2, INPUT_SIZE), lambda i: (0, 0)),
                pl.BlockSpec((1, INPUT_SIZE), lambda i: (0, 0)),
            ],
            out_specs=pl.BlockSpec((tb, INPUT_SIZE), lambda i: (i, 0)),
        ),
        compiler_params=pltpu.CompilerParams(
            dimension_semantics=("parallel",),
            vmem_limit_bytes=VMEM_LIMIT_BYTES),
    )(z, c, p["wd1_t"], p["bd1"], p["wd2_t"], p["bd2"], p["wd3_t"], p["bd3"])


# ---------------------------------------------------------------------------
# Forward pass (mirrors SMVAE_GAMMA.forward)
# ---------------------------------------------------------------------------
def smvae_gamma_forward(x, params, key, tile_batch=DEFAULT_TILE_BATCH):
    """Returns (x_recon, (mu, alpha), (std, beta)) like the PyTorch module
    (the PyTorch code names the std tensor `var`)."""
    x2 = x.reshape(-1, INPUT_SIZE)
    batch = x2.shape[0]

    tb = _pick_tile(batch, tile_batch)
    bp = _round_up(batch, tb)
    x2 = x2.astype(jnp.bfloat16)
    if bp != batch:
        x2 = jnp.pad(x2, ((0, bp - batch), (0, 0)))

    # --- encoder (Pallas): fused mean||logvar heads ---
    heads = _encoder_call(x2, params, tb)          # (bp, 20) f32
    mean, logvar = heads[:, :LATENT], heads[:, LATENT:]

    # --- get_params (tiny elementwise, plain JAX; overflow-safe alpha/beta) ---
    mu = mean[:, :DEC_LATENT]
    std = jnp.exp(0.5 * logvar[:, :DEC_LATENT])    # named `var` in the PyTorch code
    g_logmean = mean[:, DEC_LATENT]
    g_logvar = logvar[:, DEC_LATENT]
    alpha = jnp.exp(2.0 * g_logmean - g_logvar)    # == exp(logmean)^2 / exp(logvar)
    beta = jnp.exp(g_logmean - g_logvar)           # == exp(logmean)   / exp(logvar)

    # --- reparameterize ---
    # TODO(synk): Normal/Gamma rsample stays in plain JAX (jax.random); Gamma's
    # rejection sampling has no clean Pallas equivalent.
    k_eps, k_gamma = jax.random.split(key)
    eps = jax.random.normal(k_eps, mu.shape, dtype=jnp.float32)
    z = (mu + std * eps).astype(jnp.bfloat16)            # Normal(mu, std).rsample()
    c = (jax.random.gamma(k_gamma, alpha) / beta)        # Gamma(alpha, beta).rsample()
    c = c.reshape(-1, 1).astype(jnp.float32)

    # --- decoder + scale by c + clamp (Pallas) ---
    x_recon = _decoder_call(z, c, params, tb)

    return (x_recon[:batch],
            (mu[:batch], alpha[:batch]),
            (std[:batch], beta[:batch]))


# ---------------------------------------------------------------------------
# Parameter init (nn.Linear-style). Weights stored pre-transposed (in, out) and
# bf16 (MXU-native); biases stay f32 (added to f32 accumulators).
# ---------------------------------------------------------------------------
def _linear_init(key, fan_in, fan_out):
    kw, kb = jax.random.split(key)
    bound = 1.0 / (fan_in ** 0.5)
    w_t = jax.random.uniform(kw, (fan_in, fan_out), minval=-bound, maxval=bound,
                             dtype=jnp.float32).astype(jnp.bfloat16)
    b = jax.random.uniform(kb, (1, fan_out), minval=-bound, maxval=bound,
                           dtype=jnp.float32)
    return w_t, b


def init_params(key):
    keys = jax.random.split(key, 7)
    p = {}
    p["we1_t"], p["be1"] = _linear_init(keys[0], INPUT_SIZE, ENC_H1)
    p["we2_t"], p["be2"] = _linear_init(keys[1], ENC_H1, ENC_H2)
    wm, bm = _linear_init(keys[2], ENC_H2, LATENT)
    wv, bv = _linear_init(keys[3], ENC_H2, LATENT)
    p["wh_t"] = jnp.concatenate([wm, wv], axis=1)   # fused heads (32, 20)
    p["bh"] = jnp.concatenate([bm, bv], axis=1)     # (1, 20)
    p["wd1_t"], p["bd1"] = _linear_init(keys[4], DEC_LATENT, DEC_H1)
    p["wd2_t"], p["bd2"] = _linear_init(keys[5], DEC_H1, DEC_H2)
    p["wd3_t"], p["bd3"] = _linear_init(keys[6], DEC_H2, INPUT_SIZE)
    return p


# ---------------------------------------------------------------------------
# Pure-JAX references (same bf16-input / f32-accumulate recipe as the kernels)
# ---------------------------------------------------------------------------
def _encoder_ref(x2_bf16, p):
    h = jnp.dot(x2_bf16, p["we1_t"], preferred_element_type=jnp.float32) + p["be1"]
    h = jnp.maximum(h, 0.0).astype(jnp.bfloat16)
    h = jnp.dot(h, p["we2_t"], preferred_element_type=jnp.float32) + p["be2"]
    h = jnp.maximum(h, 0.0).astype(jnp.bfloat16)
    return jnp.dot(h, p["wh_t"], preferred_element_type=jnp.float32) + p["bh"]


def _decoder_ref(z_bf16, c, p):
    h = jnp.dot(z_bf16, p["wd1_t"], preferred_element_type=jnp.float32) + p["bd1"]
    h = jnp.maximum(h, 0.0).astype(jnp.bfloat16)
    h = jnp.dot(h, p["wd2_t"], preferred_element_type=jnp.float32) + p["bd2"]
    h = jnp.maximum(h, 0.0).astype(jnp.bfloat16)
    y = jnp.dot(h, p["wd3_t"], preferred_element_type=jnp.float32) + p["bd3"]
    return jnp.minimum(jax.nn.sigmoid(y) * c, 1.0)


if __name__ == "__main__":
    key = jax.random.PRNGKey(0)
    k_x, k_p, k_s, k_z, k_c = jax.random.split(key, 5)

    # Small MNIST-like input: (2, 1, 28, 28) -> view(-1, 784) gives batch=2.
    x = jax.random.normal(k_x, (2, 1, 28, 28), dtype=jnp.float32)
    params = init_params(k_p)

    # Full forward (encoder kernel -> JAX sampling -> decoder kernel).
    x_recon, (mu, alpha), (std, beta) = jax.block_until_ready(
        smvae_gamma_forward(x, params, k_s))

    assert x_recon.shape == (2, INPUT_SIZE)
    assert mu.shape == (2, DEC_LATENT) and std.shape == (2, DEC_LATENT)
    assert alpha.shape == (2,) and beta.shape == (2,)
    assert bool(jnp.all(jnp.isfinite(x_recon)))
    assert bool(jnp.all(x_recon <= 1.0 + 1e-6))

    # Deterministic correctness checks of each kernel against plain JAX with the
    # same bf16-in / f32-accumulate recipe (tolerances deliberately loosened for bf16).
    x2 = x.reshape(-1, INPUT_SIZE)
    batch = x2.shape[0]
    tb = _pick_tile(batch, DEFAULT_TILE_BATCH)
    bp = _round_up(batch, tb)
    x2p = jnp.pad(x2, ((0, bp - batch), (0, 0))).astype(jnp.bfloat16)

    heads_k = _encoder_call(x2p, params, tb)
    heads_r = _encoder_ref(x2p, params)
    assert jnp.allclose(heads_k, heads_r, atol=1e-2, rtol=1e-2)

    z_t = jax.random.normal(k_z, (bp, DEC_LATENT), dtype=jnp.float32).astype(jnp.bfloat16)
    c_t = jax.random.uniform(k_c, (bp, 1), minval=0.5, maxval=2.0, dtype=jnp.float32)
    xr_k = _decoder_call(z_t, c_t, params, tb)
    xr_r = _decoder_ref(z_t, c_t, params)
    assert jnp.allclose(xr_k, xr_r, atol=1e-2, rtol=1e-2)

    print("KERNEL_OK")
</pallas_src>

<mosaic_0001>
module attributes {stable_mosaic.version = 11 : i64} {
  func.func @_encoder_kernel(%arg0: i32, %arg1: memref<16x784xbf16, #tpu.memory_space<vmem>>, %arg2: memref<784x256xbf16, #tpu.memory_space<vmem>>, %arg3: memref<1x256xf32, #tpu.memory_space<vmem>>, %arg4: memref<256x32xbf16, #tpu.memory_space<vmem>>, %arg5: memref<1x32xf32, #tpu.memory_space<vmem>>, %arg6: memref<32x20xbf16, #tpu.memory_space<vmem>>, %arg7: memref<1x20xf32, #tpu.memory_space<vmem>>, %arg8: memref<16x20xf32, #tpu.memory_space<vmem>>) attributes {dimension_semantics = [#tpu.dimension_semantics<parallel>], iteration_bounds = array<i64: 1>, scalar_prefetch = 0 : i64, scratch_operands = 0 : i64, tpu.core_type = #tpu.core_type<tc>, window_params = [{transform_indices = @transform_0, window_bounds = array<i64: 16, 784>}, {pipeline_mode = #tpu.pipeline_mode<synchronous>, transform_indices = @transform_1, window_bounds = array<i64: 784, 256>}, {pipeline_mode = #tpu.pipeline_mode<synchronous>, transform_indices = @transform_2, window_bounds = array<i64: 1, 256>}, {pipeline_mode = #tpu.pipeline_mode<synchronous>, transform_indices = @transform_3, window_bounds = array<i64: 256, 32>}, {pipeline_mode = #tpu.pipeline_mode<synchronous>, transform_indices = @transform_4, window_bounds = array<i64: 1, 32>}, {pipeline_mode = #tpu.pipeline_mode<synchronous>, transform_indices = @transform_5, window_bounds = array<i64: 32, 20>}, {pipeline_mode = #tpu.pipeline_mode<synchronous>, transform_indices = @transform_6, window_bounds = array<i64: 1, 20>}, {transform_indices = @transform_7, window_bounds = array<i64: 16, 20>}]} {
    %c0 = arith.constant 0 : index
    %c0_0 = arith.constant 0 : index
    %0 = vector.load %arg1[%c0, %c0_0] : memref<16x784xbf16, #tpu.memory_space<vmem>>, vector<16x784xbf16>
    %c0_1 = arith.constant 0 : index
    %c0_2 = arith.constant 0 : index
    %1 = vector.load %arg2[%c0_1, %c0_2] : memref<784x256xbf16, #tpu.memory_space<vmem>>, vector<784x256xbf16>
    %cst = arith.constant dense<0.000000e+00> : vector<16x256xf32>
    %2 = tpu.matmul %0, %1, %cst {dimension_numbers = #tpu.dot_dimension_numbers<[1], [0], [0], [1], [0, 0, 1, 1], [], []>} : vector<16x784xbf16>, vector<784x256xbf16>, vector<16x256xf32> -> vector<16x256xf32>
    %c0_3 = arith.constant 0 : index
    %c0_4 = arith.constant 0 : index
    %3 = vector.load %arg3[%c0_3, %c0_4] : memref<1x256xf32, #tpu.memory_space<vmem>>, vector<1x256xf32>
    %4 = vector.broadcast %3 : vector<1x256xf32> to vector<16x256xf32>
    %5 = arith.addf %2, %4 : vector<16x256xf32>
    %cst_5 = arith.constant 0.000000e+00 : f32
    %6 = vector.broadcast %cst_5 : f32 to vector<16x256xf32>
    %7 = arith.maximumf %5, %6 : vector<16x256xf32>
    %8 = arith.truncf %7 : vector<16x256xf32> to vector<16x256xbf16>
    %c0_6 = arith.constant 0 : index
    %c0_7 = arith.constant 0 : index
    %9 = vector.load %arg4[%c0_6, %c0_7] : memref<256x32xbf16, #tpu.memory_space<vmem>>, vector<256x32xbf16>
    %cst_8 = arith.constant dense<0.000000e+00> : vector<16x32xf32>
    %10 = tpu.matmul %8, %9, %cst_8 {dimension_numbers = #tpu.dot_dimension_numbers<[1], [0], [0], [1], [0, 0, 1, 1], [], []>} : vector<16x256xbf16>, vector<256x32xbf16>, vector<16x32xf32> -> vector<16x32xf32>
    %c0_9 = arith.constant 0 : index
    %c0_10 = arith.constant 0 : index
    %11 = vector.load %arg5[%c0_9, %c0_10] : memref<1x32xf32, #tpu.memory_space<vmem>>, vector<1x32xf32>
    %12 = vector.broadcast %11 : vector<1x32xf32> to vector<16x32xf32>
    %13 = arith.addf %10, %12 : vector<16x32xf32>
    %cst_11 = arith.constant 0.000000e+00 : f32
    %14 = vector.broadcast %cst_11 : f32 to vector<16x32xf32>
    %15 = arith.maximumf %13, %14 : vector<16x32xf32>
    %16 = arith.truncf %15 : vector<16x32xf32> to vector<16x32xbf16>
    %c0_12 = arith.constant 0 : index
    %c0_13 = arith.constant 0 : index
    %17 = vector.load %arg6[%c0_12, %c0_13] : memref<32x20xbf16, #tpu.memory_space<vmem>>, vector<32x20xbf16>
    %cst_14 = arith.constant dense<0.000000e+00> : vector<16x20xf32>
    %18 = tpu.matmul %16, %17, %cst_14 {dimension_numbers = #tpu.dot_dimension_numbers<[1], [0], [0], [1], [0, 0, 1, 1], [], []>} : vector<16x32xbf16>, vector<32x20xbf16>, vector<16x20xf32> -> vector<16x20xf32>
    %c0_15 = arith.constant 0 : index
    %c0_16 = arith.constant 0 : index
    %19 = vector.load %arg7[%c0_15, %c0_16] : memref<1x20xf32, #tpu.memory_space<vmem>>, vector<1x20xf32>
    %20 = vector.broadcast %19 : vector<1x20xf32> to vector<16x20xf32>
    %21 = arith.addf %18, %20 : vector<16x20xf32>
    %c0_17 = arith.constant 0 : index
    %c0_18 = arith.constant 0 : index
    %22 = vector.load %arg8[%c0_17, %c0_18] : memref<16x20xf32, #tpu.memory_space<vmem>>, vector<16x20xf32>
    tpu.vector_store %arg8[%c0_17, %c0_18], %21 {strides = array<i32>} : memref<16x20xf32, #tpu.memory_space<vmem>>, vector<16x20xf32>,
    return
  }
  func.func @transform_0(%arg0: i32) -> (i32, i32) {
    %c0_i32 = arith.constant 0 : i32
    %c0_i32_0 = arith.constant 0 : i32
    return %arg0, %c0_i32 : i32, i32
  }
  func.func @transform_1(%arg0: i32) -> (i32, i32) {
    %c0_i32 = arith.constant 0 : i32
    %c0_i32_0 = arith.constant 0 : i32
    %c0_i32_1 = arith.constant 0 : i32
    return %c0_i32, %c0_i32_0 : i32, i32
  }
  func.func @transform_2(%arg0: i32) -> (i32, i32) {
    %c0_i32 = arith.constant 0 : i32
    %c0_i32_0 = arith.constant 0 : i32
    %c0_i32_1 = arith.constant 0 : i32
    return %c0_i32, %c0_i32_0 : i32, i32
  }
  func.func @transform_3(%arg0: i32) -> (i32, i32) {
    %c0_i32 = arith.constant 0 : i32
    %c0_i32_0 = arith.constant 0 : i32
    %c0_i32_1 = arith.constant 0 : i32
    return %c0_i32, %c0_i32_0 : i32, i32
  }
  func.func @transform_4(%arg0: i32) -> (i32, i32) {
    %c0_i32 = arith.constant 0 : i32
    %c0_i32_0 = arith.constant 0 : i32
    %c0_i32_1 = arith.constant 0 : i32
    return %c0_i32, %c0_i32_0 : i32, i32
  }
  func.func @transform_5(%arg0: i32) -> (i32, i32) {
    %c0_i32 = arith.constant 0 : i32
    %c0_i32_0 = arith.constant 0 : i32
    %c0_i32_1 = arith.constant 0 : i32
    return %c0_i32, %c0_i32_0 : i32, i32
  }
  func.func @transform_6(%arg0: i32) -> (i32, i32) {
    %c0_i32 = arith.constant 0 : i32
    %c0_i32_0 = arith.constant 0 : i32
    %c0_i32_1 = arith.constant 0 : i32
    return %c0_i32, %c0_i32_0 : i32, i32
  }
  func.func @transform_7(%arg0: i32) -> (i32, i32) {
    %c0_i32 = arith.constant 0 : i32
    %c0_i32_0 = arith.constant 0 : i32
    return %arg0, %c0_i32 : i32, i32
  }
}

</mosaic_0001>

<llo_original>
// kernel: tpu_custom_call.1
$region0: #{tpu_custom_call.1}
  #allocation0 [shape = 'u32[]', space=smem, size = 0x4, offset = 0x4, fixed_abs, tag = 'smem constant byte address 0x4 - core index']
  #allocation1 [shape = 'u32[144,128]{1,0:T(1,128)}', space=vmem, size = 0x12000, scoped, tag = 'internal scratch']
  %s0 = inlined_call_operand.vmem [shape: bf16[16,784], index: 0, kind: input, shape index: {}]
  %s1 = inlined_call_operand.hbm [shape: bf16[784,256], index: 1, kind: input, shape index: {}]
  %s2 = inlined_call_operand.vmem [shape: f32[1,256], index: 2, kind: input, shape index: {}]
  %s3 = inlined_call_operand.vmem [shape: bf16[256,32], index: 3, kind: input, shape index: {}]
  %s4 = inlined_call_operand.vmem [shape: f32[1,32], index: 4, kind: input, shape index: {}]
  %s5 = inlined_call_operand.vmem [shape: bf16[32,20], index: 5, kind: input, shape index: {}]
  %s6 = inlined_call_operand.vmem [shape: f32[1,20], index: 6, kind: input, shape index: {}]
  %s7 = inlined_call_operand.hbm [shape: f32[16,20], index: 7, kind: output, shape index: {}]
  %s8 = sld [smem:[#allocation0]]
  $region42: #{tpu_custom_call.1} parent=0
    _
  %s10 = ssub.s32 1, %s8
  %s11 = scalar_select 0, %s10, %s8
  $region1: #{tpu_custom_call.1} parent=0
    #allocation2 [shape = 'u8[401408]{0}', space=vmem, size = 0x62000, scoped, tag = 'input window, operand 1, single buffered']
    #allocation3 [shape = 's32[1]{0}', space=sflag, size = 0x4, scoped, tag = 'scoped memory for tpu_custom_call.1']
    #allocation4 [shape = 's32[1]{0}', space=sflag, size = 0x4, scoped, tag = 'scoped memory for tpu_custom_call.1']
    #allocation5 [shape = 'u8[8192]{0}', space=vmem, size = 0x2000, scoped, tag = 'output window, operand 0, single buffered']
    %12 = vsyncpa [#allocation3], 0
    %13 = vsyncpa [#allocation4], 0
    // Predicated region
    $region2: #{tpu_custom_call.1} parent=1 // pred_check
      _
    $region3: #{tpu_custom_call.1} parent=1 // pred_check_branch
      %15 = sbr.rel (0) target = $region5
    $region4: #{tpu_custom_call.1} parent=1 // pred_region
      _
    $region5: #{tpu_custom_call.1} parent=1 // pred_fallthru
      _
    // Predicated region
    $region6: #{tpu_custom_call.1} parent=1 // pred_check
      _
    $region7: #{tpu_custom_call.1} parent=1 // pred_check_branch
      %17 = sbr.rel (0) target = $region9
    $region8: #{tpu_custom_call.1} parent=1 // pred_region
      %s19 = ssub.s32 12544, 12544
      %20 = vsyncadd [#allocation3], %s19
      %s21 = sshll.u32 [#allocation2], 4
      %s22 = int_to_ptr.vmem [resolvable:$true] %s21
      %27 = dma.hbm_to_vmem [thread:$0]  %s1, 12544, %s22, [#allocation3], 128, 128, 8
    $region9: #{tpu_custom_call.1} parent=1 // pred_fallthru
      _
    // Predicated region
    $region10: #{tpu_custom_call.1} parent=1 // pred_check
      _
    $region11: #{tpu_custom_call.1} parent=1 // pred_check_branch
      %29 = sbr.rel (0) target = $region13
    $region12: #{tpu_custom_call.1} parent=1 // pred_region
      _
    $region13: #{tpu_custom_call.1} parent=1 // pred_fallthru
      _
    // Predicated region
    $region14: #{tpu_custom_call.1} parent=1 // pred_check
      _
    $region15: #{tpu_custom_call.1} parent=1 // pred_check_branch
      %31 = sbr.rel (0) target = $region17
    $region16: #{tpu_custom_call.1} parent=1 // pred_region
      _
    $region17: #{tpu_custom_call.1} parent=1 // pred_fallthru
      _
    // Predicated region
    $region18: #{tpu_custom_call.1} parent=1 // pred_check
      _
    $region19: #{tpu_custom_call.1} parent=1 // pred_check_branch
      %33 = sbr.rel (0) target = $region21
    $region20: #{tpu_custom_call.1} parent=1 // pred_region
      _
    $region21: #{tpu_custom_call.1} parent=1 // pred_fallthru
      _
    // Predicated region
    $region22: #{tpu_custom_call.1} parent=1 // pred_check
      _
    $region23: #{tpu_custom_call.1} parent=1 // pred_check_branch
      %35 = sbr.rel (0) target = $region25
    $region24: #{tpu_custom_call.1} parent=1 // pred_region
      _
    $region25: #{tpu_custom_call.1} parent=1 // pred_fallthru
      _
    // Predicated region
    $region26: #{tpu_custom_call.1} parent=1 // pred_check
      _
    $region27: #{tpu_custom_call.1} parent=1 // pred_check_branch
      %37 = sbr.rel (0) target = $region29
    $region28: #{tpu_custom_call.1} parent=1 // pred_region
      _
    $region29: #{tpu_custom_call.1} parent=1 // pred_fallthru
      _
    // Predicated region
    $region30: #{tpu_custom_call.1} parent=1 // pred_check
      _
    $region31: #{tpu_custom_call.1} parent=1 // pred_check_branch
      %39 = sbr.rel (0) target = $region33
    $region32: #{tpu_custom_call.1} parent=1 // pred_region
      %40 = dma.done [#allocation3], 12544
    $region33: #{tpu_custom_call.1} parent=1 // pred_fallthru
      _
    %v42 = vld [vmem:[%s0] sm:$0xff]
    %v43 = vld [vmem:[%s0 + $0x8] sm:$0xff]
    %v44 = vld [vmem:[%s0 + $0x10] sm:$0xff]
    %v45 = vld [vmem:[%s0 + $0x18] sm:$0xf]
    %v46 = vld [vmem:[%s0 + $0x1c] sm:$0xff]
    %v47 = vld [vmem:[%s0 + $0x24] sm:$0xff]
    %v48 = vld [vmem:[%s0 + $0x2c] sm:$0xff]
    %v49 = vld [vmem:[%s0 + $0x34] sm:$0xf]
    %v50 = vld [vmem:[#allocation2] sm:$0xff]
    %v51 = vld [vmem:[#allocation2 + $0x8] sm:$0xff]
    %v52 = vld [vmem:[#allocation2 + $0x10] sm:$0xff]
    %v53 = vld [vmem:[#allocation2 + $0x18] sm:$0xff]
    %v54 = vld [vmem:[#allocation2 + $0x20] sm:$0xff]
    %v55 = vld [vmem:[#allocation2 + $0x28] sm:$0xff]
    %v56 = vld [vmem:[#allocation2 + $0x30] sm:$0xff]
    %v57 = vld [vmem:[#allocation2 + $0x38] sm:$0xff]
    %v58 = vld [vmem:[#allocation2 + $0x40] sm:$0xff]
    %v59 = vld [vmem:[#allocation2 + $0x48] sm:$0xff]
    %v60 = vld [vmem:[#allocation2 + $0x50] sm:$0xff]
    %v61 = vld [vmem:[#allocation2 + $0x58] sm:$0xff]
    %v62 = vld [vmem:[#allocation2 + $0x60] sm:$0xff]
    %v63 = vld [vmem:[#allocation2 + $0x68] sm:$0xff]
    %v64 = vld [vmem:[#allocation2 + $0x70] sm:$0xff]
    %v65 = vld [vmem:[#allocation2 + $0x78] sm:$0xff]
    %v66 = vld [vmem:[#allocation2 + $0x80] sm:$0xff]
    %v67 = vld [vmem:[#allocation2 + $0x88] sm:$0xff]
    %v68 = vld [vmem:[#allocation2 + $0x90] sm:$0xff]
    %v69 = vld [vmem:[#allocation2 + $0x98] sm:$0xff]
    %v70 = vld [vmem:[#allocation2 + $0xa0] sm:$0xff]
    %v71 = vld [vmem:[#allocation2 + $0xa8] sm:$0xff]
    %v72 = vld [vmem:[#allocation2 + $0xb0] sm:$0xff]
    %v73 = vld [vmem:[#allocation2 + $0xb8] sm:$0xff]
    %v74 = vld [vmem:[#allocation2 + $0xc0] sm:$0xff]
    %v75 = vld [vmem:[#allocation2 + $0xc8] sm:$0xff]
    %v76 = vld [vmem:[#allocation2 + $0xd0] sm:$0xff]
    %v77 = vld [vmem:[#allocation2 + $0xd8] sm:$0xff]
    %v78 = vld [vmem:[#allocation2 + $0xe0] sm:$0xff]
    %v79 = vld [vmem:[#allocation2 + $0xe8] sm:$0xff]
    %v80 = vld [vmem:[#allocation2 + $0xf0] sm:$0xff]
    %v81 = vld [vmem:[#allocation2 + $0xf8] sm:$0xff]
    %v82 = vld [vmem:[#allocation2 + $0x100] sm:$0xff]
    %v83 = vld [vmem:[#allocation2 + $0x108] sm:$0xff]
    %v84 = vld [vmem:[#allocation2 + $0x110] sm:$0xff]
    %v85 = vld [vmem:[#allocation2 + $0x118] sm:$0xff]
    %v86 = vld [vmem:[#allocation2 + $0x120] sm:$0xff]
    %v87 = vld [vmem:[#allocation2 + $0x128] sm:$0xff]
    %v88 = vld [vmem:[#allocation2 + $0x130] sm:$0xff]
    %v89 = vld [vmem:[#allocation2 + $0x138] sm:$0xff]
    %v90 = vld [vmem:[#allocation2 + $0x140] sm:$0xff]
    %v91 = vld [vmem:[#allocation2 + $0x148] sm:$0xff]
    %v92 = vld [vmem:[#allocation2 + $0x150] sm:$0xff]
    %v93 = vld [vmem:[#allocation2 + $0x158] sm:$0xff]
    %v94 = vld [vmem:[#allocation2 + $0x160] sm:$0xff]
    %v95 = vld [vmem:[#allocation2 + $0x168] sm:$0xff]
    %v96 = vld [vmem:[#allocation2 + $0x170] sm:$0xff]
    %v97 = vld [vmem:[#allocation2 + $0x178] sm:$0xff]
    %v98 = vld [vmem:[#allocation2 + $0x180] sm:$0xff]
    %v99 = vld [vmem:[#allocation2 + $0x188] sm:$0xff]
    %v100 = vld [vmem:[#allocation2 + $0x190] sm:$0xff]
    %v101 = vld [vmem:[#allocation2 + $0x198] sm:$0xff]
    %v102 = vld [vmem:[#allocation2 + $0x1a0] sm:$0xff]
    %v103 = vld [vmem:[#allocation2 + $0x1a8] sm:$0xff]
    %v104 = vld [vmem:[#allocation2 + $0x1b0] sm:$0xff]
    %v105 = vld [vmem:[#allocation2 + $0x1b8] sm:$0xff]
    %v106 = vld [vmem:[#allocation2 + $0x1c0] sm:$0xff]
    %v107 = vld [vmem:[#allocation2 + $0x1c8] sm:$0xff]
    %v108 = vld [vmem:[#allocation2 + $0x1d0] sm:$0xff]
    %v109 = vld [vmem:[#allocation2 + $0x1d8] sm:$0xff]
    %v110 = vld [vmem:[#allocation2 + $0x1e0] sm:$0xff]
    %v111 = vld [vmem:[#allocation2 + $0x1e8] sm:$0xff]
    %v112 = vld [vmem:[#allocation2 + $0x1f0] sm:$0xff]
    %v113 = vld [vmem:[#allocation2 + $0x1f8] sm:$0xff]
    %v114 = vld [vmem:[#allocation2 + $0x200] sm:$0xff]
    %v115 = vld [vmem:[#allocation2 + $0x208] sm:$0xff]
    %v116 = vld [vmem:[#allocation2 + $0x210] sm:$0xff]
    %v117 = vld [vmem:[#allocation2 + $0x218] sm:$0xff]
    %v118 = vld [vmem:[#allocation2 + $0x220] sm:$0xff]
    %v119 = vld [vmem:[#allocation2 + $0x228] sm:$0xff]
    %v120 = vld [vmem:[#allocation2 + $0x230] sm:$0xff]
    %v121 = vld [vmem:[#allocation2 + $0x238] sm:$0xff]
    %v122 = vld [vmem:[#allocation2 + $0x240] sm:$0xff]
    %v123 = vld [vmem:[#allocation2 + $0x248] sm:$0xff]
    %v124 = vld [vmem:[#allocation2 + $0x250] sm:$0xff]
    %v125 = vld [vmem:[#allocation2 + $0x258] sm:$0xff]
    %v126 = vld [vmem:[#allocation2 + $0x260] sm:$0xff]
    %v127 = vld [vmem:[#allocation2 + $0x268] sm:$0xff]
    %v128 = vld [vmem:[#allocation2 + $0x270] sm:$0xff]
    %v129 = vld [vmem:[#allocation2 + $0x278] sm:$0xff]
    %v130 = vld [vmem:[#allocation2 + $0x280] sm:$0xff]
    %v131 = vld [vmem:[#allocation2 + $0x288] sm:$0xff]
    %v132 = vld [vmem:[#allocation2 + $0x290] sm:$0xff]
    %v133 = vld [vmem:[#allocation2 + $0x298] sm:$0xff]
    %v134 = vld [vmem:[#allocation2 + $0x2a0] sm:$0xff]
    %v135 = vld [vmem:[#allocation2 + $0x2a8] sm:$0xff]
    %v136 = vld [vmem:[#allocation2 + $0x2b0] sm:$0xff]
    %v137 = vld [vmem:[#allocation2 + $0x2b8] sm:$0xff]
    %v138 = vld [vmem:[#allocation2 + $0x2c0] sm:$0xff]
    %v139 = vld [vmem:[#allocation2 + $0x2c8] sm:$0xff]
    %v140 = vld [vmem:[#allocation2 + $0x2d0] sm:$0xff]
    %v141 = vld [vmem:[#allocation2 + $0x2d8] sm:$0xff]
    %v142 = vld [vmem:[#allocation2 + $0x2e0] sm:$0xff]
    %v143 = vld [vmem:[#allocation2 + $0x2e8] sm:$0xff]
    %v144 = vld [vmem:[#allocation2 + $0x2f0] sm:$0xff]
    %v145 = vld [vmem:[#allocation2 + $0x2f8] sm:$0xff]
    %v146 = vld [vmem:[#allocation2 + $0x300] sm:$0xff]
    %v147 = vld [vmem:[#allocation2 + $0x308] sm:$0xff]
    %v148 = vld [vmem:[%s2] sm:$0x3]
    %v150 = vlaneseq
    %v151 = vshrl.u32 %v150, 7
    %v152 = vsub.s32 0, %v151
    %v153 = vrot.slane %v148, %v152
    %v154 = vlaneseq
    %v155 = vshrl.u32 %v154, 7
    %v156 = vsub.s32 1, %v155
    %v157 = vrot.slane %v148, %v156
    %v168 = vunpack.c.l.b16 %v42
    %v169 = vunpack.c.h.b16 %v42
    %v170 = vunpack.c.l.b16 %v43
    %v171 = vunpack.c.h.b16 %v43
    %v172 = vunpack.c.l.b16 %v44
    %v173 = vunpack.c.h.b16 %v44
    %v174 = vunpack.c.l.b16 %v45
    %v175 = vunpack.c.l.b16 %v46
    %v176 = vunpack.c.h.b16 %v46
    %v177 = vunpack.c.l.b16 %v47
    %v178 = vunpack.c.h.b16 %v47
    %v179 = vunpack.c.l.b16 %v48
    %v180 = vunpack.c.h.b16 %v48
    %v181 = vunpack.c.l.b16 %v49
    %v182 = vpack.c.b16 %v175, %v168
    %v183 = vpack.c.b16 %v176, %v169
    %v184 = vpack.c.b16 %v177, %v170
    %v185 = vpack.c.b16 %v178, %v171
    %v186 = vpack.c.b16 %v179, %v172
    %v187 = vpack.c.b16 %v180, %v173
    %v188 = vpack.c.b16 %v181, %v174
    %v293 = vunpack.c.l.b16 %v50
    %v294 = vunpack.c.h.b16 %v50
    %v295 = vunpack.c.l.b16 %v51
    %v296 = vunpack.c.h.b16 %v51
    %v297 = vunpack.c.l.b16 %v52
    %v298 = vunpack.c.h.b16 %v52
    %v299 = vunpack.c.l.b16 %v53
    %v300 = vunpack.c.h.b16 %v53
    %v301 = vunpack.c.l.b16 %v54
    %v302 = vunpack.c.h.b16 %v54
    %v303 = vunpack.c.l.b16 %v55
    %v304 = vunpack.c.h.b16 %v55
    %v305 = vunpack.c.l.b16 %v56
    %v306 = vunpack.c.h.b16 %v56
    %v307 = vunpack.c.l.b16 %v57
    %v308 = vunpack.c.h.b16 %v57
    %v309 = vunpack.c.l.b16 %v58
    %v310 = vunpack.c.h.b16 %v58
    %v311 = vunpack.c.l.b16 %v59
    %v312 = vunpack.c.h.b16 %v59
    %v313 = vunpack.c.l.b16 %v60
    %v314 = vunpack.c.h.b16 %v60
    %v315 = vunpack.c.l.b16 %v61
    %v316 = vunpack.c.h.b16 %v61
    %v317 = vunpack.c.l.b16 %v62
    %v318 = vunpack.c.h.b16 %v62
    %v319 = vunpack.c.l.b16 %v63
    %v320 = vunpack.c.h.b16 %v63
    %v321 = vunpack.c.l.b16 %v64
    %v322 = vunpack.c.h.b16 %v64
    %v323 = vunpack.c.l.b16 %v65
    %v324 = vunpack.c.h.b16 %v65
    %v325 = vunpack.c.l.b16 %v66
    %v326 = vunpack.c.h.b16 %v66
    %v327 = vunpack.c.l.b16 %v67
    %v328 = vunpack.c.h.b16 %v67
    %v329 = vunpack.c.l.b16 %v68
    %v330 = vunpack.c.h.b16 %v68
    %v331 = vunpack.c.l.b16 %v69
    %v332 = vunpack.c.h.b16 %v69
    %v333 = vunpack.c.l.b16 %v70
    %v334 = vunpack.c.h.b16 %v70
    %v335 = vunpack.c.l.b16 %v71
    %v336 = vunpack.c.h.b16 %v71
    %v337 = vunpack.c.l.b16 %v72
    %v338 = vunpack.c.h.b16 %v72
    %v339 = vunpack.c.l.b16 %v73
    %v340 = vunpack.c.h.b16 %v73
    %v341 = vunpack.c.l.b16 %v74
    %v342 = vunpack.c.h.b16 %v74
    %v343 = vunpack.c.l.b16 %v75
    %v344 = vunpack.c.h.b16 %v75
    %v345 = vunpack.c.l.b16 %v76
    %v346 = vunpack.c.h.b16 %v76
    %v347 = vunpack.c.l.b16 %v77
    %v348 = vunpack.c.h.b16 %v77
    %v349 = vunpack.c.l.b16 %v78
    %v350 = vunpack.c.h.b16 %v78
    %v351 = vunpack.c.l.b16 %v79
    %v352 = vunpack.c.h.b16 %v79
    %v353 = vunpack.c.l.b16 %v80
    %v354 = vunpack.c.h.b16 %v80
    %v355 = vunpack.c.l.b16 %v81
    %v356 = vunpack.c.h.b16 %v81
    %v357 = vunpack.c.l.b16 %v82
    %v358 = vunpack.c.h.b16 %v82
    %v359 = vunpack.c.l.b16 %v83
    %v360 = vunpack.c.h.b16 %v83
    %v361 = vunpack.c.l.b16 %v84
    %v362 = vunpack.c.h.b16 %v84
    %v363 = vunpack.c.l.b16 %v85
    %v364 = vunpack.c.h.b16 %v85
    %v365 = vunpack.c.l.b16 %v86
    %v366 = vunpack.c.h.b16 %v86
    %v367 = vunpack.c.l.b16 %v87
    %v368 = vunpack.c.h.b16 %v87
    %v369 = vunpack.c.l.b16 %v88
    %v370 = vunpack.c.h.b16 %v88
    %v371 = vunpack.c.l.b16 %v89
    %v372 = vunpack.c.h.b16 %v89
    %v373 = vunpack.c.l.b16 %v90
    %v374 = vunpack.c.h.b16 %v90
    %v375 = vunpack.c.l.b16 %v91
    %v376 = vunpack.c.h.b16 %v91
    %v377 = vunpack.c.l.b16 %v92
    %v378 = vunpack.c.h.b16 %v92
    %v379 = vunpack.c.l.b16 %v93
    %v380 = vunpack.c.h.b16 %v93
    %v381 = vunpack.c.l.b16 %v94
    %v382 = vunpack.c.h.b16 %v94
    %v383 = vunpack.c.l.b16 %v95
    %v384 = vunpack.c.h.b16 %v95
    %v385 = vunpack.c.l.b16 %v96
    %v386 = vunpack.c.h.b16 %v96
    %v387 = vunpack.c.l.b16 %v97
    %v388 = vunpack.c.h.b16 %v97
    %v389 = vunpack.c.l.b16 %v98
    %v390 = vunpack.c.h.b16 %v98
    %v391 = vunpack.c.l.b16 %v99
    %v392 = vunpack.c.h.b16 %v99
    %v393 = vunpack.c.l.b16 %v100
    %v394 = vunpack.c.h.b16 %v100
    %v395 = vunpack.c.l.b16 %v101
    %v396 = vunpack.c.h.b16 %v101
    %v397 = vunpack.c.l.b16 %v102
    %v398 = vunpack.c.h.b16 %v102
    %v399 = vunpack.c.l.b16 %v103
    %v400 = vunpack.c.h.b16 %v103
    %v401 = vunpack.c.l.b16 %v104
    %v402 = vunpack.c.h.b16 %v104
    %v403 = vunpack.c.l.b16 %v105
    %v404 = vunpack.c.h.b16 %v105
    %v405 = vunpack.c.l.b16 %v106
    %v406 = vunpack.c.h.b16 %v106
    %v407 = vunpack.c.l.b16 %v107
    %v408 = vunpack.c.h.b16 %v107
    %v409 = vunpack.c.l.b16 %v108
    %v410 = vunpack.c.h.b16 %v108
    %v411 = vunpack.c.l.b16 %v109
    %v412 = vunpack.c.h.b16 %v109
    %v413 = vunpack.c.l.b16 %v110
    %v414 = vunpack.c.h.b16 %v110
    %v415 = vunpack.c.l.b16 %v111
    %v416 = vunpack.c.h.b16 %v111
    %v417 = vunpack.c.l.b16 %v112
    %v418 = vunpack.c.h.b16 %v112
    %v419 = vunpack.c.l.b16 %v113
    %v420 = vunpack.c.h.b16 %v113
    %v421 = vunpack.c.l.b16 %v114
    %v422 = vunpack.c.h.b16 %v114
    %v423 = vunpack.c.l.b16 %v115
    %v424 = vunpack.c.h.b16 %v115
    %v425 = vunpack.c.l.b16 %v116
    %v426 = vunpack.c.h.b16 %v116
    %v427 = vunpack.c.l.b16 %v117
    %v428 = vunpack.c.h.b16 %v117
    %v429 = vunpack.c.l.b16 %v118
    %v430 = vunpack.c.h.b16 %v118
    %v431 = vunpack.c.l.b16 %v119
    %v432 = vunpack.c.h.b16 %v119
    %v433 = vunpack.c.l.b16 %v120
    %v434 = vunpack.c.h.b16 %v120
    %v435 = vunpack.c.l.b16 %v121
    %v436 = vunpack.c.h.b16 %v121
    %v437 = vunpack.c.l.b16 %v122
    %v438 = vunpack.c.h.b16 %v122
    %v439 = vunpack.c.l.b16 %v123
    %v440 = vunpack.c.h.b16 %v123
    %v441 = vunpack.c.l.b16 %v124
    %v442 = vunpack.c.h.b16 %v124
    %v443 = vunpack.c.l.b16 %v125
    %v444 = vunpack.c.h.b16 %v125
    %v445 = vunpack.c.l.b16 %v126
    %v446 = vunpack.c.h.b16 %v126
    %v447 = vunpack.c.l.b16 %v127
    %v448 = vunpack.c.h.b16 %v127
    %v449 = vunpack.c.l.b16 %v128
    %v450 = vunpack.c.h.b16 %v128
    %v451 = vunpack.c.l.b16 %v129
    %v452 = vunpack.c.h.b16 %v129
    %v453 = vunpack.c.l.b16 %v130
    %v454 = vunpack.c.h.b16 %v130
    %v455 = vunpack.c.l.b16 %v131
    %v456 = vunpack.c.h.b16 %v131
    %v457 = vunpack.c.l.b16 %v132
    %v458 = vunpack.c.h.b16 %v132
    %v459 = vunpack.c.l.b16 %v133
    %v460 = vunpack.c.h.b16 %v133
    %v461 = vunpack.c.l.b16 %v134
    %v462 = vunpack.c.h.b16 %v134
    %v463 = vunpack.c.l.b16 %v135
    %v464 = vunpack.c.h.b16 %v135
    %v465 = vunpack.c.l.b16 %v136
    %v466 = vunpack.c.h.b16 %v136
    %v467 = vunpack.c.l.b16 %v137
    %v468 = vunpack.c.h.b16 %v137
    %v469 = vunpack.c.l.b16 %v138
    %v470 = vunpack.c.h.b16 %v138
    %v471 = vunpack.c.l.b16 %v139
    %v472 = vunpack.c.h.b16 %v139
    %v473 = vunpack.c.l.b16 %v140
    %v474 = vunpack.c.h.b16 %v140
    %v475 = vunpack.c.l.b16 %v141
    %v476 = vunpack.c.h.b16 %v141
    %v477 = vunpack.c.l.b16 %v142
    %v478 = vunpack.c.h.b16 %v142
    %v479 = vunpack.c.l.b16 %v143
    %v480 = vunpack.c.h.b16 %v143
    %v481 = vunpack.c.l.b16 %v144
    %v482 = vunpack.c.h.b16 %v144
    %v483 = vunpack.c.l.b16 %v145
    %v484 = vunpack.c.h.b16 %v145
    %v485 = vunpack.c.l.b16 %v146
    %v486 = vunpack.c.h.b16 %v146
    %v487 = vunpack.c.l.b16 %v147
    %v488 = vunpack.c.h.b16 %v147
    %v489 = vpack.c.b16 %v295, %v293
    %v490 = vpack.c.b16 %v296, %v294
    %v491 = vpack.c.b16 %v299, %v297
    %v492 = vpack.c.b16 %v300, %v298
    %v493 = vpack.c.b16 %v303, %v301
    %v494 = vpack.c.b16 %v304, %v302
    %v495 = vpack.c.b16 %v307, %v305
    %v496 = vpack.c.b16 %v308, %v306
    %v497 = vpack.c.b16 %v311, %v309
    %v498 = vpack.c.b16 %v312, %v310
    %v499 = vpack.c.b16 %v315, %v313
    %v500 = vpack.c.b16 %v316, %v314
    %v501 = vpack.c.b16 %v319, %v317
    %v502 = vpack.c.b16 %v320, %v318
    %v503 = vpack.c.b16 %v323, %v321
    %v504 = vpack.c.b16 %v324, %v322
    %v505 = vpack.c.b16 %v327, %v325
    %v506 = vpack.c.b16 %v328, %v326
    %v507 = vpack.c.b16 %v331, %v329
    %v508 = vpack.c.b16 %v332, %v330
    %v509 = vpack.c.b16 %v335, %v333
    %v510 = vpack.c.b16 %v336, %v334
    %v511 = vpack.c.b16 %v339, %v337
    %v512 = vpack.c.b16 %v340, %v338
    %v513 = vpack.c.b16 %v343, %v341
    %v514 = vpack.c.b16 %v344, %v342
    %v515 = vpack.c.b16 %v347, %v345
    %v516 = vpack.c.b16 %v348, %v346
    %v517 = vpack.c.b16 %v351, %v349
    %v518 = vpack.c.b16 %v352, %v350
    %v519 = vpack.c.b16 %v355, %v353
    %v520 = vpack.c.b16 %v356, %v354
    %v521 = vpack.c.b16 %v359, %v357
    %v522 = vpack.c.b16 %v360, %v358
    %v523 = vpack.c.b16 %v363, %v361
    %v524 = vpack.c.b16 %v364, %v362
    %v525 = vpack.c.b16 %v367, %v365
    %v526 = vpack.c.b16 %v368, %v366
    %v527 = vpack.c.b16 %v371, %v369
    %v528 = vpack.c.b16 %v372, %v370
    %v529 = vpack.c.b16 %v375, %v373
    %v530 = vpack.c.b16 %v376, %v374
    %v531 = vpack.c.b16 %v379, %v377
    %v532 = vpack.c.b16 %v380, %v378
    %v533 = vpack.c.b16 %v383, %v381
    %v534 = vpack.c.b16 %v384, %v382
    %v535 = vpack.c.b16 %v387, %v385
    %v536 = vpack.c.b16 %v388, %v386
    %v537 = vpack.c.b16 %v391, %v389
    %v538 = vpack.c.b16 %v392, %v390
    %v539 = vpack.c.b16 %v395, %v393
    %v540 = vpack.c.b16 %v396, %v394
    %v541 = vpack.c.b16 %v399, %v397
    %v542 = vpack.c.b16 %v400, %v398
    %v543 = vpack.c.b16 %v403, %v401
    %v544 = vpack.c.b16 %v404, %v402
    %v545 = vpack.c.b16 %v407, %v405
    %v546 = vpack.c.b16 %v408, %v406
    %v547 = vpack.c.b16 %v411, %v409
    %v548 = vpack.c.b16 %v412, %v410
    %v549 = vpack.c.b16 %v415, %v413
    %v550 = vpack.c.b16 %v416, %v414
    %v551 = vpack.c.b16 %v419, %v417
    %v552 = vpack.c.b16 %v420, %v418
    %v553 = vpack.c.b16 %v423, %v421
    %v554 = vpack.c.b16 %v424, %v422
    %v555 = vpack.c.b16 %v427, %v425
    %v556 = vpack.c.b16 %v428, %v426
    %v557 = vpack.c.b16 %v431, %v429
    %v558 = vpack.c.b16 %v432, %v430
    %v559 = vpack.c.b16 %v435, %v433
    %v560 = vpack.c.b16 %v436, %v434
    %v561 = vpack.c.b16 %v439, %v437
    %v562 = vpack.c.b16 %v440, %v438
    %v563 = vpack.c.b16 %v443, %v441
    %v564 = vpack.c.b16 %v444, %v442
    %v565 = vpack.c.b16 %v447, %v445
    %v566 = vpack.c.b16 %v448, %v446
    %v567 = vpack.c.b16 %v451, %v449
    %v568 = vpack.c.b16 %v452, %v450
    %v569 = vpack.c.b16 %v455, %v453
    %v570 = vpack.c.b16 %v456, %v454
    %v571 = vpack.c.b16 %v459, %v457
    %v572 = vpack.c.b16 %v460, %v458
    %v573 = vpack.c.b16 %v463, %v461
    %v574 = vpack.c.b16 %v464, %v462
    %v575 = vpack.c.b16 %v467, %v465
    %v576 = vpack.c.b16 %v468, %v466
    %v577 = vpack.c.b16 %v471, %v469
    %v578 = vpack.c.b16 %v472, %v470
    %v579 = vpack.c.b16 %v475, %v473
    %v580 = vpack.c.b16 %v476, %v474
    %v581 = vpack.c.b16 %v479, %v477
    %v582 = vpack.c.b16 %v480, %v478
    %v583 = vpack.c.b16 %v483, %v481
    %v584 = vpack.c.b16 %v484, %v482
    %v585 = vpack.c.b16 %v487, %v485
    %v586 = vpack.c.b16 %v488, %v486
    %vm685 = vcmask 130048
    %v687 = vsel %vm685, %v188, 0
    %689 = vmatprep.subr.bf16.mxu0 %v504
    %690 = vmatpush1.bf16.msra.mxu0 %v503
    %691 = vmatprep.subr.bf16.mxu0 %v502
    %692 = vmatpush1.bf16.msra.mxu0 %v501
    %693 = vmatprep.subr.bf16.mxu0 %v500
    %694 = vmatpush1.bf16.msra.mxu0 %v499
    %695 = vmatprep.subr.bf16.mxu0 %v498
    %696 = vmatpush1.bf16.msra.mxu0 %v497
    %697 = vmatprep.subr.bf16.mxu0 %v496
    %698 = vmatpush1.bf16.msra.mxu0 %v495
    %699 = vmatprep.subr.bf16.mxu0 %v494
    %700 = vmatpush1.bf16.msra.mxu0 %v493
    %701 = vmatprep.subr.bf16.mxu0 %v492
    %702 = vmatpush1.bf16.msra.mxu0 %v491
    %703 = vmatprep.subr.bf16.mxu0 %v490
    %704 = vmatpush1.bf16.msra.mxu0 %v489
    %705 = vmatprep.subr.bf16.mxu0 %v520
    %706 = vmatpush2.bf16.msra.mxu0 %v519
    %707 = vmatprep.subr.bf16.mxu0 %v518
    %708 = vmatpush2.bf16.msra.mxu0 %v517
    %709 = vmatprep.subr.bf16.mxu0 %v516
    %710 = vmatpush2.bf16.msra.mxu0 %v515
    %711 = vmatprep.subr.bf16.mxu0 %v514
    %712 = vmatpush2.bf16.msra.mxu0 %v513
    %713 = vmatprep.subr.bf16.mxu0 %v512
    %714 = vmatpush2.bf16.msra.mxu0 %v511
    %715 = vmatprep.subr.bf16.mxu0 %v510
    %716 = vmatpush2.bf16.msra.mxu0 %v509
    %717 = vmatprep.subr.bf16.mxu0 %v508
    %718 = vmatpush2.bf16.msra.mxu0 %v507
    %719 = vmatprep.subr.bf16.mxu0 %v506
    %720 = vmatpush2.bf16.msra.mxu0 %v505
    %721 = vmatprep.mubr.bf16.mxu0 %v183
    %722 = vmatmul.mubr.bf16.gmra.mxu0 %v182
    %v723 = vpop.f32.mrf.mxu0
    %v724 = vadd.f32 %v153, %v723
    %v725 = vpop.f32.mrf.mxu0
    %v726 = vadd.f32 %v157, %v725
    %v727 = vpop.f32.mrf.mxu0
    %v728 = vadd.f32 %v153, %v727
    %v729 = vpop.f32.mrf.mxu0
    %v730 = vadd.f32 %v157, %v729
    %731 = vdwg.mxu0
    %732 = vmatprep.subr.bf16.mxu0 %v536
    %733 = vmatpush1.bf16.msra.mxu0 %v535
    %734 = vmatprep.subr.bf16.mxu0 %v534
    %735 = vmatpush1.bf16.msra.mxu0 %v533
    %736 = vmatprep.subr.bf16.mxu0 %v532
    %737 = vmatpush1.bf16.msra.mxu0 %v531
    %738 = vmatprep.subr.bf16.mxu0 %v530
    %739 = vmatpush1.bf16.msra.mxu0 %v529
    %740 = vmatprep.subr.bf16.mxu0 %v528
    %741 = vmatpush1.bf16.msra.mxu0 %v527
    %742 = vmatprep.subr.bf16.mxu0 %v526
    %743 = vmatpush1.bf16.msra.mxu0 %v525
    %744 = vmatprep.subr.bf16.mxu0 %v524
    %745 = vmatpush1.bf16.msra.mxu0 %v523
    %746 = vmatprep.subr.bf16.mxu0 %v522
    %747 = vmatpush1.bf16.msra.mxu0 %v521
    %748 = vmatprep.subr.bf16.mxu0 %v552
    %749 = vmatpush2.bf16.msra.mxu0 %v551
    %750 = vmatprep.subr.bf16.mxu0 %v550
    %751 = vmatpush2.bf16.msra.mxu0 %v549
    %752 = vmatprep.subr.bf16.mxu0 %v548
    %753 = vmatpush2.bf16.msra.mxu0 %v547
    %754 = vmatprep.subr.bf16.mxu0 %v546
    %755 = vmatpush2.bf16.msra.mxu0 %v545
    %756 = vmatprep.subr.bf16.mxu0 %v544
    %757 = vmatpush2.bf16.msra.mxu0 %v543
    %758 = vmatprep.subr.bf16.mxu0 %v542
    %759 = vmatpush2.bf16.msra.mxu0 %v541
    %760 = vmatprep.subr.bf16.mxu0 %v540
    %761 = vmatpush2.bf16.msra.mxu0 %v539
    %762 = vmatprep.subr.bf16.mxu0 %v538
    %763 = vmatpush2.bf16.msra.mxu0 %v537
    %764 = vmatprep.mubr.bf16.mxu0 %v185
    %765 = vmatmul.mubr.bf16.gmra.mxu0 %v184
    %v766 = vpop.f32.mrf.mxu0
    %v767 = vadd.f32 %v724, %v766
    %v768 = vpop.f32.mrf.mxu0
    %v769 = vadd.f32 %v726, %v768
    %v770 = vpop.f32.mrf.mxu0
    %v771 = vadd.f32 %v728, %v770
    %v772 = vpop.f32.mrf.mxu0
    %v773 = vadd.f32 %v730, %v772
    %774 = vdwg.mxu0
    %775 = vmatprep.subr.bf16.mxu0 %v568
    %776 = vmatpush1.bf16.msra.mxu0 %v567
    %777 = vmatprep.subr.bf16.mxu0 %v566
    %778 = vmatpush1.bf16.msra.mxu0 %v565
    %779 = vmatprep.subr.bf16.mxu0 %v564
    %780 = vmatpush1.bf16.msra.mxu0 %v563
    %781 = vmatprep.subr.bf16.mxu0 %v562
    %782 = vmatpush1.bf16.msra.mxu0 %v561
    %783 = vmatprep.subr.bf16.mxu0 %v560
    %784 = vmatpush1.bf16.msra.mxu0 %v559
    %785 = vmatprep.subr.bf16.mxu0 %v558
    %786 = vmatpush1.bf16.msra.mxu0 %v557
    %787 = vmatprep.subr.bf16.mxu0 %v556
    %788 = vmatpush1.bf16.msra.mxu0 %v555
    %789 = vmatprep.subr.bf16.mxu0 %v554
    %790 = vmatpush1.bf16.msra.mxu0 %v553
    %791 = vmatprep.subr.bf16.mxu0 %v584
    %792 = vmatpush2.bf16.msra.mxu0 %v583
    %793 = vmatprep.subr.bf16.mxu0 %v582
    %794 = vmatpush2.bf16.msra.mxu0 %v581
    %795 = vmatprep.subr.bf16.mxu0 %v580
    %796 = vmatpush2.bf16.msra.mxu0 %v579
    %797 = vmatprep.subr.bf16.mxu0 %v578
    %798 = vmatpush2.bf16.msra.mxu0 %v577
    %799 = vmatprep.subr.bf16.mxu0 %v576
    %800 = vmatpush2.bf16.msra.mxu0 %v575
    %801 = vmatprep.subr.bf16.mxu0 %v574
    %802 = vmatpush2.bf16.msra.mxu0 %v573
    %803 = vmatprep.subr.bf16.mxu0 %v572
    %804 = vmatpush2.bf16.msra.mxu0 %v571
    %805 = vmatprep.subr.bf16.mxu0 %v570
    %806 = vmatpush2.bf16.msra.mxu0 %v569
    %807 = vmatprep.mubr.bf16.mxu0 %v187
    %808 = vmatmul.mubr.bf16.gmra.mxu0 %v186
    %v809 = vpop.f32.mrf.mxu0
    %v810 = vadd.f32 %v767, %v809
    %v811 = vpop.f32.mrf.mxu0
    %v812 = vadd.f32 %v769, %v811
    %v813 = vpop.f32.mrf.mxu0
    %v814 = vadd.f32 %v771, %v813
    %v815 = vpop.f32.mrf.mxu0
    %v816 = vadd.f32 %v773, %v815
    %817 = vdwg.mxu0
    %818 = vmatprep.subr.bf16.mxu0 0
    %819 = vmatpush1.bf16.msra.mxu0 0
    %820 = vmatprep.subr.bf16.mxu0 0
    %821 = vmatpush1.bf16.msra.mxu0 0
    %822 = vmatprep.subr.bf16.mxu0 0
    %823 = vmatpush1.bf16.msra.mxu0 0
    %824 = vmatprep.subr.bf16.mxu0 0
    %825 = vmatpush1.bf16.msra.mxu0 0
    %826 = vmatprep.subr.bf16.mxu0 0
    %827 = vmatpush1.bf16.msra.mxu0 0
    %828 = vmatprep.subr.bf16.mxu0 0
    %829 = vmatpush1.bf16.msra.mxu0 0
    %830 = vmatprep.subr.bf16.mxu0 0
    %831 = vmatpush1.bf16.msra.mxu0 0
    %832 = vmatprep.subr.bf16.mxu0 %v586
    %833 = vmatpush1.bf16.msra.mxu0 %v585
    %834 = vmatprep.subr.bf16.mxu0 0
    %835 = vmatpush2.bf16.msra.mxu0 0
    %836 = vmatprep.subr.bf16.mxu0 0
    %837 = vmatpush2.bf16.msra.mxu0 0
    %838 = vmatprep.subr.bf16.mxu0 0
    %839 = vmatpush2.bf16.msra.mxu0 0
    %840 = vmatprep.subr.bf16.mxu0 0
    %841 = vmatpush2.bf16.msra.mxu0 0
    %842 = vmatprep.subr.bf16.mxu0 0
    %843 = vmatpush2.bf16.msra.mxu0 0
    %844 = vmatprep.subr.bf16.mxu0 0
    %845 = vmatpush2.bf16.msra.mxu0 0
    %846 = vmatprep.subr.bf16.mxu0 0
    %847 = vmatpush2.bf16.msra.mxu0 0
    %848 = vmatprep.subr.bf16.mxu0 0
    %849 = vmatpush2.bf16.msra.mxu0 0
    %850 = vmatprep.mubr.bf16.mxu0 0
    %851 = vmatmul.mubr.bf16.gmra.mxu0 %v687
    %v852 = vpop.f32.mrf.mxu0
    %v853 = vadd.f32 %v810, %v852
    %v854 = vpop.f32.mrf.mxu0
    %v855 = vadd.f32 %v812, %v854
    %v856 = vpop.f32.mrf.mxu0
    %v857 = vadd.f32 %v814, %v856
    %v858 = vpop.f32.mrf.mxu0
    %v859 = vadd.f32 %v816, %v858
    %860 = vdwg.mxu0
    %v861 = vmax.f32 %v853, 0.0
    %v862 = vmax.f32 %v855, 0.0
    %v863 = vmax.f32 %v857, 0.0
    %v864 = vmax.f32 %v859, 0.0
    %v865 = vpack.c.bf16 %v863, %v861
    %v866 = vpack.c.bf16 %v864, %v862
    %v867 = vld [vmem:[%s3] sm:$0xf]
    %v868 = vld [vmem:[%s3 + $0x4] sm:$0xf]
    %v869 = vld [vmem:[%s3 + $0x8] sm:$0xf]
    %v870 = vld [vmem:[%s3 + $0xc] sm:$0xf]
    %v871 = vld [vmem:[%s3 + $0x10] sm:$0xf]
    %v872 = vld [vmem:[%s3 + $0x14] sm:$0xf]
    %v873 = vld [vmem:[%s3 + $0x18] sm:$0xf]
    %v874 = vld [vmem:[%s3 + $0x1c] sm:$0xf]
    %v875 = vld [vmem:[%s3 + $0x20] sm:$0xf]
    %v876 = vld [vmem:[%s3 + $0x24] sm:$0xf]
    %v877 = vld [vmem:[%s3 + $0x28] sm:$0xf]
    %v878 = vld [vmem:[%s3 + $0x2c] sm:$0xf]
    %v879 = vld [vmem:[%s3 + $0x30] sm:$0xf]
    %v880 = vld [vmem:[%s3 + $0x34] sm:$0xf]
    %v881 = vld [vmem:[%s3 + $0x38] sm:$0xf]
    %v882 = vld [vmem:[%s3 + $0x3c] sm:$0xf]
    %v883 = vld [vmem:[%s3 + $0x40] sm:$0xf]
    %v884 = vld [vmem:[%s3 + $0x44] sm:$0xf]
    %v885 = vld [vmem:[%s3 + $0x48] sm:$0xf]
    %v886 = vld [vmem:[%s3 + $0x4c] sm:$0xf]
    %v887 = vld [vmem:[%s3 + $0x50] sm:$0xf]
    %v888 = vld [vmem:[%s3 + $0x54] sm:$0xf]
    %v889 = vld [vmem:[%s3 + $0x58] sm:$0xf]
    %v890 = vld [vmem:[%s3 + $0x5c] sm:$0xf]
    %v891 = vld [vmem:[%s3 + $0x60] sm:$0xf]
    %v892 = vld [vmem:[%s3 + $0x64] sm:$0xf]
    %v893 = vld [vmem:[%s3 + $0x68] sm:$0xf]
    %v894 = vld [vmem:[%s3 + $0x6c] sm:$0xf]
    %v895 = vld [vmem:[%s3 + $0x70] sm:$0xf]
    %v896 = vld [vmem:[%s3 + $0x74] sm:$0xf]
    %v897 = vld [vmem:[%s3 + $0x78] sm:$0xf]
    %v898 = vld [vmem:[%s3 + $0x7c] sm:$0xf]
    %v899 = vld [vmem:[%s4] sm:$0x1]
    %v901 = vlaneseq
    %v902 = vshrl.u32 %v901, 7
    %v903 = vsub.s32 0, %v902
    %v904 = vrot.slane %v899, %v903
    %v938 = vunpack.c.l.b16 %v867
    %v939 = vunpack.c.l.b16 %v868
    %v940 = vunpack.c.l.b16 %v869
    %v941 = vunpack.c.l.b16 %v870
    %v942 = vunpack.c.l.b16 %v871
    %v943 = vunpack.c.l.b16 %v872
    %v944 = vunpack.c.l.b16 %v873
    %v945 = vunpack.c.l.b16 %v874
    %v946 = vunpack.c.l.b16 %v875
    %v947 = vunpack.c.l.b16 %v876
    %v948 = vunpack.c.l.b16 %v877
    %v949 = vunpack.c.l.b16 %v878
    %v950 = vunpack.c.l.b16 %v879
    %v951 = vunpack.c.l.b16 %v880
    %v952 = vunpack.c.l.b16 %v881
    %v953 = vunpack.c.l.b16 %v882
    %v954 = vunpack.c.l.b16 %v883
    %v955 = vunpack.c.l.b16 %v884
    %v956 = vunpack.c.l.b16 %v885
    %v957 = vunpack.c.l.b16 %v886
    %v958 = vunpack.c.l.b16 %v887
    %v959 = vunpack.c.l.b16 %v888
    %v960 = vunpack.c.l.b16 %v889
    %v961 = vunpack.c.l.b16 %v890
    %v962 = vunpack.c.l.b16 %v891
    %v963 = vunpack.c.l.b16 %v892
    %v964 = vunpack.c.l.b16 %v893
    %v965 = vunpack.c.l.b16 %v894
    %v966 = vunpack.c.l.b16 %v895
    %v967 = vunpack.c.l.b16 %v896
    %v968 = vunpack.c.l.b16 %v897
    %v969 = vunpack.c.l.b16 %v898
    %v970 = vpack.c.b16 %v939, %v938
    %v971 = vpack.c.b16 %v941, %v940
    %v972 = vpack.c.b16 %v943, %v942
    %v973 = vpack.c.b16 %v945, %v944
    %v974 = vpack.c.b16 %v947, %v946
    %v975 = vpack.c.b16 %v949, %v948
    %v976 = vpack.c.b16 %v951, %v950
    %v977 = vpack.c.b16 %v953, %v952
    %v978 = vpack.c.b16 %v955, %v954
    %v979 = vpack.c.b16 %v957, %v956
    %v980 = vpack.c.b16 %v959, %v958
    %v981 = vpack.c.b16 %v961, %v960
    %v982 = vpack.c.b16 %v963, %v962
    %v983 = vpack.c.b16 %v965, %v964
    %v984 = vpack.c.b16 %v967, %v966
    %v985 = vpack.c.b16 %v969, %v968
    %1002 = vmatprep.subr.bf16.mxu0 0
    %1003 = vmatpush1.bf16.msra.mxu0 %v977
    %1004 = vmatprep.subr.bf16.mxu0 0
    %1005 = vmatpush1.bf16.msra.mxu0 %v976
    %1006 = vmatprep.subr.bf16.mxu0 0
    %1007 = vmatpush1.bf16.msra.mxu0 %v975
    %1008 = vmatprep.subr.bf16.mxu0 0
    %1009 = vmatpush1.bf16.msra.mxu0 %v974
    %1010 = vmatprep.subr.bf16.mxu0 0
    %1011 = vmatpush1.bf16.msra.mxu0 %v973
    %1012 = vmatprep.subr.bf16.mxu0 0
    %1013 = vmatpush1.bf16.msra.mxu0 %v972
    %1014 = vmatprep.subr.bf16.mxu0 0
    %1015 = vmatpush1.bf16.msra.mxu0 %v971
    %1016 = vmatprep.subr.bf16.mxu0 0
    %1017 = vmatpush1.bf16.msra.mxu0 %v970
    %1018 = vmatprep.subr.bf16.mxu0 0
    %1019 = vmatpush2.bf16.msra.mxu0 %v985
    %1020 = vmatprep.subr.bf16.mxu0 0
    %1021 = vmatpush2.bf16.msra.mxu0 %v984
    %1022 = vmatprep.subr.bf16.mxu0 0
    %1023 = vmatpush2.bf16.msra.mxu0 %v983
    %1024 = vmatprep.subr.bf16.mxu0 0
    %1025 = vmatpush2.bf16.msra.mxu0 %v982
    %1026 = vmatprep.subr.bf16.mxu0 0
    %1027 = vmatpush2.bf16.msra.mxu0 %v981
    %1028 = vmatprep.subr.bf16.mxu0 0
    %1029 = vmatpush2.bf16.msra.mxu0 %v980
    %1030 = vmatprep.subr.bf16.mxu0 0
    %1031 = vmatpush2.bf16.msra.mxu0 %v979
    %1032 = vmatprep.subr.bf16.mxu0 0
    %1033 = vmatpush2.bf16.msra.mxu0 %v978
    %1034 = vmatprep.mubr.bf16.mxu0 %v866
    %1035 = vmatmul.mubr.bf16.gmra.mxu0 %v865
    %v1036 = vpop.f32.mrf.mxu0
    %v1037 = vadd.f32 %v904, %v1036
    %v1038 = vpop.f32.mrf.mxu0
    %v1039 = vpop.f32.mrf.mxu0
    %v1040 = vadd.f32 %v904, %v1039
    %v1041 = vpop.f32.mrf.mxu0
    %1042 = vdwg.mxu0
    %v1043 = vmax.f32 %v1037, 0.0
    %v1044 = vmax.f32 %v1040, 0.0
    %v1045 = vpack.c.bf16 %v1044, %v1043
    %v1046 = vld [vmem:[%s5] sm:$0xf]
    %v1047 = vld [vmem:[%s5 + $0x4] sm:$0xf]
    %v1048 = vld [vmem:[%s5 + $0x8] sm:$0xf]
    %v1049 = vld [vmem:[%s5 + $0xc] sm:$0xf]
    %v1050 = vld [vmem:[%s6] sm:$0x1]
    %v1052 = vlaneseq
    %v1053 = vshrl.u32 %v1052, 7
    %v1054 = vsub.s32 0, %v1053
    %v1055 = vrot.slane %v1050, %v1054
    %v1061 = vunpack.c.l.b16 %v1046
    %v1062 = vunpack.c.l.b16 %v1047
    %v1063 = vunpack.c.l.b16 %v1048
    %v1064 = vunpack.c.l.b16 %v1049
    %v1065 = vpack.c.b16 %v1062, %v1061
    %v1066 = vpack.c.b16 %v1064, %v1063
    %vm1069 = vcmask 261120
    %v1071 = vsel %vm1069, %v1045, 0
    %1073 = vmatprep.subr.bf16.mxu0 0
    %1074 = vmatpush1.bf16.msra.mxu0 0
    %1075 = vmatprep.subr.bf16.mxu0 0
    %1076 = vmatpush1.bf16.msra.mxu0 0
    %1077 = vmatprep.subr.bf16.mxu0 0
    %1078 = vmatpush1.bf16.msra.mxu0 0
    %1079 = vmatprep.subr.bf16.mxu0 0
    %1080 = vmatpush1.bf16.msra.mxu0 0
    %1081 = vmatprep.subr.bf16.mxu0 0
    %1082 = vmatpush1.bf16.msra.mxu0 0
    %1083 = vmatprep.subr.bf16.mxu0 0
    %1084 = vmatpush1.bf16.msra.mxu0 0
    %1085 = vmatprep.subr.bf16.mxu0 0
    %1086 = vmatpush1.bf16.msra.mxu0 %v1066
    %1087 = vmatprep.subr.bf16.mxu0 0
    %1088 = vmatpush1.bf16.msra.mxu0 %v1065
    %1089 = vmatprep.subr.bf16.mxu0 0
    %1090 = vmatpush2.bf16.msra.mxu0 0
    %1091 = vmatprep.subr.bf16.mxu0 0
    %1092 = vmatpush2.bf16.msra.mxu0 0
    %1093 = vmatprep.subr.bf16.mxu0 0
    %1094 = vmatpush2.bf16.msra.mxu0 0
    %1095 = vmatprep.subr.bf16.mxu0 0
    %1096 = vmatpush2.bf16.msra.mxu0 0
    %1097 = vmatprep.subr.bf16.mxu0 0
    %1098 = vmatpush2.bf16.msra.mxu0 0
    %1099 = vmatprep.subr.bf16.mxu0 0
    %1100 = vmatpush2.bf16.msra.mxu0 0
    %1101 = vmatprep.subr.bf16.mxu0 0
    %1102 = vmatpush2.bf16.msra.mxu0 0
    %1103 = vmatprep.subr.bf16.mxu0 0
    %1104 = vmatpush2.bf16.msra.mxu0 0
    %1105 = vmatprep.mubr.bf16.mxu0 0
    %1106 = vmatmul.mubr.bf16.gmra.mxu0 %v1071
    %v1107 = vpop.f32.mrf.mxu0
    %v1108 = vadd.f32 %v1055, %v1107
    %v1109 = vpop.f32.mrf.mxu0
    %v1110 = vpop.f32.mrf.mxu0
    %v1111 = vadd.f32 %v1055, %v1110
    %v1112 = vpop.f32.mrf.mxu0
    %1113 = vdwg.mxu0
    %vm1114 = vcmask 162816
    %1115 = vst.msk [vmem:[#allocation5] sm:$0xff] %vm1114, %v1108
    %1116 = vst.msk [vmem:[#allocation5 + $0x8] sm:$0xff] %vm1114, %v1111
    // Predicated region
    $region34: #{tpu_custom_call.1} parent=1 // pred_check
      _
    $region35: #{tpu_custom_call.1} parent=1 // pred_check_branch
      %1118 = sbr.rel (0) target = $region37
    $region36: #{tpu_custom_call.1} parent=1 // pred_region
      %s1120 = ssub.s32 256, 256
      %1121 = vsyncadd [#allocation4], %s1120
      %s1122 = sshll.u32 [#allocation5], 4
      %s1123 = int_to_ptr.vmem [resolvable:$true] %s1122
      %1128 = dma.vmem_to_hbm [thread:$0]  %s1123, 256, %s7, [#allocation4], 128, 128, 8
    $region37: #{tpu_custom_call.1} parent=1 // pred_fallthru
      _
    // Predicated region
    $region38: #{tpu_custom_call.1} parent=1 // pred_check
      _
    $region39: #{tpu_custom_call.1} parent=1 // pred_check_branch
      %1130 = sbr.rel (0) target = $region41
    $region40: #{tpu_custom_call.1} parent=1 // pred_region
      %1131 = dma.done [#allocation4], 256
    $region41: #{tpu_custom_call.1} parent=1 // pred_fallthru
      _
    %1132 = vsyncpa [#allocation3], 1
    %1133 = vsyncpa [#allocation4], 1

</llo_original>
